<compile_context>
chip_gen: v6e
topology: v6e:2x2x1
jax: 0.10.0
libtpu: 0.0.40
codegen_flags: <defaults>
</compile_context>

<pallas_src>
import functools

import numpy as np
import jax
import jax.numpy as jnp
from jax.experimental import pallas as pl
from jax.experimental.pallas import tpu as pltpu


class Config(object):
    def __init__(self):
        self.vocab_size = 6
        self.d_model = 20
        self.n_heads = 2
        assert self.d_model % self.n_heads == 0
        self.dim_k = self.d_model // self.n_heads
        self.dim_v = self.d_model // self.n_heads
        self.padding_size = 30
        self.UNK = 5
        self.PAD = 4
        self.N = 6
        self.p = 0.1


config = Config()


def _round_up(x, m):
    return ((x + m - 1) // m) * m


# ----------------------------- Embedding kernel -----------------------------
def _embedding_kernel(idx_ref, tblT_ref, o_ref, *, vocab_size):
    # idx_ref : (1, tm)  int32 token ids (lane-dense)
    # tblT_ref: (D, V)   f32 transposed embedding table (tiny, fully resident)
    # o_ref   : (D, tm)  f32 output (lane axis = tokens -> unmasked stores)
    ids = idx_ref[...]                                              # (1, tm)
    iota = jax.lax.broadcasted_iota(jnp.int32, (vocab_size, ids.shape[1]), 0)
    onehot = (iota == ids).astype(jnp.float32)                      # (V, tm)
    # Gather-as-matmul on the MXU: exactly one 1.0 per column -> exact copy of
    # the selected table row; no per-token DMA gathers, no masked vst.msk.
    o_ref[...] = jnp.dot(tblT_ref[...], onehot,
                         preferred_element_type=jnp.float32)


def pallas_embedding(flat_idx, table_T, *, max_tile=8192):
    """out[i, :] = table_T[:, flat_idx[i]]  (i.e. table[flat_idx[i]]).

    flat_idx: (M,) int32, table_T: (D, V) f32  ->  (M, D) f32.
    """
    M = flat_idx.shape[0]
    D, V = table_T.shape

    # Tile sizing: as few / as large tiles as possible (amortize the ~0.35 us
    # per-step overhead), tm a multiple of 128 (lane axis), minimal padding
    # on the last tile.
    n_tiles = max(1, -(-M // max_tile))
    tm = _round_up(-(-M // n_tiles), 128)
    Mp = n_tiles * tm

    # Single pad op; tail ids use PAD (zero embedding row) and are sliced off.
    ids_row = jnp.pad(flat_idx.astype(jnp.int32), (0, Mp - M),
                      constant_values=config.PAD).reshape(1, Mp)

    kern = functools.partial(_embedding_kernel, vocab_size=V)
    out_T = pl.pallas_call(
        kern,
        out_shape=jax.ShapeDtypeStruct((D, Mp), jnp.float32),
        grid=(n_tiles,),
        in_specs=[
            pl.BlockSpec((1, tm), lambda i: (0, i)),   # lane-dense id row tile
            pl.BlockSpec((D, V), lambda i: (0, 0)),    # full (tiny) table^T
        ],
        out_specs=pl.BlockSpec((D, tm), lambda i: (0, i)),
        compiler_params=pltpu.CompilerParams(
            dimension_semantics=("parallel",)),        # megacore-splittable
    )(ids_row, table_T)

    # The module contract is (..., d_model)-last, so one small slice+transpose
    # XLA op here; a downstream consumer that accepts (D, M) could skip it.
    return out_T[:, :M].T


# --------------------------------- Module ------------------------------------
class EmbeddingPallas:
    def __init__(self, vocab_size, key):
        # nn.Embedding default init: N(0, 1); padding_idx row is zeroed.
        w = jax.random.normal(key, (vocab_size, config.d_model), jnp.float32)
        self.weight = w.at[config.PAD].set(0.0)            # (V, D) reference layout
        self.weight_T = jnp.asarray(self.weight.T)         # (D, V) kernel layout, built once
        self.vocab_size = vocab_size

    @staticmethod
    def _pad_or_truncate(x):
        # Host-side replica of the reference's python-list preprocessing
        # (ragged lists -> fixed (B, padding_size) int32), vectorized in NumPy.
        # TODO(synk): ragged host Python lists have no Pallas equivalent; this is pure data prep.
        B = len(x)
        out = np.full((B, config.padding_size), config.UNK, dtype=np.int32)
        for i, row in enumerate(x):
            row = np.asarray(list(row)[:config.padding_size], dtype=np.int32)
            out[i, :row.shape[0]] = row
        return out

    def __call__(self, x):
        idx = self._pad_or_truncate(x)                     # (B, S) np.int32
        B, S = idx.shape
        flat = jnp.asarray(idx.reshape(B * S))             # single H2D copy
        out = pallas_embedding(flat, self.weight_T)        # (B*S, D)
        return out.reshape(B, S, config.d_model)


# ----------------------------- Pure-JAX reference ----------------------------
def reference_forward(mod, x):
    idx = jnp.asarray(EmbeddingPallas._pad_or_truncate(x))
    return jnp.take(mod.weight, idx, axis=0)


if __name__ == "__main__":
    key = jax.random.PRNGKey(0)
    mod = EmbeddingPallas(config.vocab_size, key)

    # Two ragged sequences: one shorter than padding_size (gets UNK-padded),
    # one longer (gets truncated); includes PAD tokens (zero embedding row).
    x = [
        [0, 1, 2, 3, 4, 0, 1],
        [2, 3, 1, 0, 5, 4, 2, 1, 0, 3, 2, 1, 0, 4, 5,
         2, 3, 1, 0, 5, 4, 2, 1, 0, 3, 2, 1, 0, 4, 5, 1, 2, 3],
    ]

    out = mod(x)
    out = jax.block_until_ready(out)

    ref = reference_forward(mod, x)
    assert out.shape == (2, config.padding_size, config.d_model), out.shape
    assert jnp.allclose(out, ref, atol=1e-6, rtol=1e-6), "mismatch vs reference"
    print("KERNEL_OK")
</pallas_src>

<mosaic_0001>
module attributes {stable_mosaic.version = 11 : i64} {
  func.func @_embedding_kernel(%arg0: i32, %arg1: memref<1x128xi32, #tpu.memory_space<vmem>>, %arg2: memref<20x6xf32, #tpu.memory_space<vmem>>, %arg3: memref<20x128xf32, #tpu.memory_space<vmem>>) attributes {dimension_semantics = [#tpu.dimension_semantics<parallel>], iteration_bounds = array<i64: 1>, scalar_prefetch = 0 : i64, scratch_operands = 0 : i64, tpu.core_type = #tpu.core_type<tc>, window_params = [{transform_indices = @transform_0, window_bounds = array<i64: 1, 128>}, {pipeline_mode = #tpu.pipeline_mode<synchronous>, transform_indices = @transform_1, window_bounds = array<i64: 20, 6>}, {transform_indices = @transform_2, window_bounds = array<i64: 20, 128>}]} {
    %c0 = arith.constant 0 : index
    %c0_0 = arith.constant 0 : index
    %0 = vector.load %arg1[%c0, %c0_0] : memref<1x128xi32, #tpu.memory_space<vmem>>, vector<1x128xi32>
    %1 = tpu.iota {dimensions = array<i32: 0>} : vector<6x128xi32>
    %2 = vector.broadcast %0 : vector<1x128xi32> to vector<6x128xi32>
    %3 = arith.cmpi eq, %1, %2 : vector<6x128xi32>
    %4 = arith.extui %3 : vector<6x128xi1> to vector<6x128xi32>
    %5 = arith.sitofp %4 : vector<6x128xi32> to vector<6x128xf32>
    %c0_1 = arith.constant 0 : index
    %c0_2 = arith.constant 0 : index
    %6 = vector.load %arg2[%c0_1, %c0_2] : memref<20x6xf32, #tpu.memory_space<vmem>>, vector<20x6xf32>
    %cst = arith.constant dense<0.000000e+00> : vector<20x128xf32>
    %7 = tpu.matmul %6, %5, %cst {dimension_numbers = #tpu.dot_dimension_numbers<[1], [0], [0], [1], [0, 0, 1, 1], [], []>} : vector<20x6xf32>, vector<6x128xf32>, vector<20x128xf32> -> vector<20x128xf32>
    %c0_3 = arith.constant 0 : index
    %c0_4 = arith.constant 0 : index
    %8 = vector.load %arg3[%c0_3, %c0_4] : memref<20x128xf32, #tpu.memory_space<vmem>>, vector<20x128xf32>
    tpu.vector_store %arg3[%c0_3, %c0_4], %7 {strides = array<i32>} : memref<20x128xf32, #tpu.memory_space<vmem>>, vector<20x128xf32>,
    return
  }
  func.func @transform_0(%arg0: i32) -> (i32, i32) {
    %c0_i32 = arith.constant 0 : i32
    %c0_i32_0 = arith.constant 0 : i32
    return %c0_i32, %arg0 : i32, i32
  }
  func.func @transform_1(%arg0: i32) -> (i32, i32) {
    %c0_i32 = arith.constant 0 : i32
    %c0_i32_0 = arith.constant 0 : i32
    %c0_i32_1 = arith.constant 0 : i32
    return %c0_i32, %c0_i32_0 : i32, i32
  }
  func.func @transform_2(%arg0: i32) -> (i32, i32) {
    %c0_i32 = arith.constant 0 : i32
    %c0_i32_0 = arith.constant 0 : i32
    return %c0_i32, %arg0 : i32, i32
  }
}

</mosaic_0001>

<llo_original>
// kernel: tpu_custom_call.1
$region0: #{tpu_custom_call.1}
  #allocation0 [shape = 'u32[]', space=smem, size = 0x4, offset = 0x4, fixed_abs, tag = 'smem constant byte address 0x4 - core index']
  #allocation1 [shape = 'u32[144,128]{1,0:T(1,128)}', space=vmem, size = 0x12000, scoped, tag = 'internal scratch']
  %s0 = inlined_call_operand.vmem [shape: s32[1,128], index: 0, kind: input, shape index: {}]
  %s1 = inlined_call_operand.vmem [shape: f32[20,6], index: 1, kind: input, shape index: {}]
  %s2 = inlined_call_operand.hbm [shape: f32[20,128], index: 2, kind: output, shape index: {}]
  %s3 = sld [smem:[#allocation0]]
  $region18: #{tpu_custom_call.1} parent=0
    _
  %s5 = ssub.s32 1, %s3
  %s6 = scalar_select 0, %s5, %s3
  $region1: #{tpu_custom_call.1} parent=0
    #allocation2 [shape = 'u8[12288]{0}', space=vmem, size = 0x3000, scoped, tag = 'output window, operand 0, single buffered']
    #allocation3 [shape = 's32[1]{0}', space=sflag, size = 0x4, scoped, tag = 'scoped memory for tpu_custom_call.1']
    %7 = vsyncpa [#allocation3], 0
    // Predicated region
    $region2: #{tpu_custom_call.1} parent=1 // pred_check
      _
    $region3: #{tpu_custom_call.1} parent=1 // pred_check_branch
      %9 = sbr.rel (0) target = $region5
    $region4: #{tpu_custom_call.1} parent=1 // pred_region
      _
    $region5: #{tpu_custom_call.1} parent=1 // pred_fallthru
      _
    // Predicated region
    $region6: #{tpu_custom_call.1} parent=1 // pred_check
      _
    $region7: #{tpu_custom_call.1} parent=1 // pred_check_branch
      %11 = sbr.rel (0) target = $region9
    $region8: #{tpu_custom_call.1} parent=1 // pred_region
      _
    $region9: #{tpu_custom_call.1} parent=1 // pred_fallthru
      _
    %v12 = vld [vmem:[%s0] sm:$0x1]
    %v13 = vlaneseq
    %v14 = vshrl.u32 %v13, 7
    %v15 = vlaneseq
    %v16 = vshrl.u32 %v15, 7
    %v17 = vsub.s32 0, %v16
    %v18 = vrot.slane %v12, %v17
    %vm19 = vcmp.eq.s32.totalorder %v14, %v18
    %v20 = vsel %vm19, 1, 0
    %v21 = vcvt.s32.f32 %v20
    %v22 = vld [vmem:[%s1] sm:$0xff]
    %v23 = vld [vmem:[%s1 + $0x8] sm:$0xff]
    %v24 = vld [vmem:[%s1 + $0x10] sm:$0xf]
    %vm25 = vcmask 48128
    %v27 = vsel %vm25, %v22, 0
    %v30 = vsel %vm25, %v23, 0
    %v33 = vsel %vm25, %v24, 0
    %vm35 = vcmask 1045504
    %v37 = vsel %vm35, %v21, 0
    %39 = vmatprep.subr.mxu0 0.0
    %40 = vmatpush1.msra.mxu0 0.0
    %41 = vmatprep.subr.mxu0 0.0
    %42 = vmatpush1.msra.mxu0 0.0
    %43 = vmatprep.subr.mxu0 0.0
    %44 = vmatpush1.msra.mxu0 0.0
    %45 = vmatprep.subr.mxu0 0.0
    %46 = vmatpush1.msra.mxu0 0.0
    %47 = vmatprep.subr.mxu0 0.0
    %48 = vmatpush1.msra.mxu0 0.0
    %49 = vmatprep.subr.mxu0 0.0
    %50 = vmatpush1.msra.mxu0 0.0
    %51 = vmatprep.subr.mxu0 0.0
    %52 = vmatpush1.msra.mxu0 0.0
    %53 = vmatprep.subr.mxu0 0.0
    %54 = vmatpush1.msra.mxu0 0.0
    %55 = vmatprep.subr.mxu0 0.0
    %56 = vmatpush1.msra.mxu0 0.0
    %57 = vmatprep.subr.mxu0 0.0
    %58 = vmatpush1.msra.mxu0 0.0
    %59 = vmatprep.subr.mxu0 0.0
    %60 = vmatpush1.msra.mxu0 0.0
    %61 = vmatprep.subr.mxu0 0.0
    %62 = vmatpush1.msra.mxu0 0.0
    %63 = vmatprep.subr.mxu0 0.0
    %64 = vmatpush1.msra.mxu0 0.0
    %65 = vmatprep.subr.mxu0 0.0
    %66 = vmatpush1.msra.mxu0 0.0
    %67 = vmatprep.subr.mxu0 0.0
    %68 = vmatpush1.msra.mxu0 0.0
    %69 = vmatprep.subr.mxu0 0.0
    %70 = vmatpush1.msra.mxu0 %v37
    %71 = vmatprep.subr.mxu0 0.0
    %72 = vmatpush2.msra.mxu0 0.0
    %73 = vmatprep.subr.mxu0 0.0
    %74 = vmatpush2.msra.mxu0 0.0
    %75 = vmatprep.subr.mxu0 0.0
    %76 = vmatpush2.msra.mxu0 0.0
    %77 = vmatprep.subr.mxu0 0.0
    %78 = vmatpush2.msra.mxu0 0.0
    %79 = vmatprep.subr.mxu0 0.0
    %80 = vmatpush2.msra.mxu0 0.0
    %81 = vmatprep.subr.mxu0 0.0
    %82 = vmatpush2.msra.mxu0 0.0
    %83 = vmatprep.subr.mxu0 0.0
    %84 = vmatpush2.msra.mxu0 0.0
    %85 = vmatprep.subr.mxu0 0.0
    %86 = vmatpush2.msra.mxu0 0.0
    %87 = vmatprep.subr.mxu0 0.0
    %88 = vmatpush2.msra.mxu0 0.0
    %89 = vmatprep.subr.mxu0 0.0
    %90 = vmatpush2.msra.mxu0 0.0
    %91 = vmatprep.subr.mxu0 0.0
    %92 = vmatpush2.msra.mxu0 0.0
    %93 = vmatprep.subr.mxu0 0.0
    %94 = vmatpush2.msra.mxu0 0.0
    %95 = vmatprep.subr.mxu0 0.0
    %96 = vmatpush2.msra.mxu0 0.0
    %97 = vmatprep.subr.mxu0 0.0
    %98 = vmatpush2.msra.mxu0 0.0
    %99 = vmatprep.subr.mxu0 0.0
    %100 = vmatpush2.msra.mxu0 0.0
    %101 = vmatprep.subr.mxu0 0.0
    %102 = vmatpush2.msra.mxu0 0.0
    %103 = vmatprep.mubr.f32.mxu0 0.0
    %104 = vmatmul.mubr.f32.gmra.mxu0 %v27
    %v105 = vpop.f32.mrf.mxu0
    %v106 = vadd.f32 0.0, %v105
    %v107 = vpop.f32.mrf.mxu0
    %108 = vmatprep.mubr.f32.mxu0 0.0
    %109 = vmatmul.mubr.f32.gmra.mxu0 %v30
    %v110 = vpop.f32.mrf.mxu0
    %v111 = vadd.f32 0.0, %v110
    %v112 = vpop.f32.mrf.mxu0
    %113 = vmatprep.mubr.f32.mxu0 0.0
    %114 = vmatmul.mubr.f32.gmra.mxu0 %v33
    %v115 = vpop.f32.mrf.mxu0
    %v116 = vadd.f32 0.0, %v115
    %v117 = vpop.f32.mrf.mxu0
    %118 = vdwg.mxu0
    %119 = vst [vmem:[#allocation2] sm:$0xff] %v106
    %120 = vst [vmem:[#allocation2 + $0x8] sm:$0xff] %v111
    %121 = vst [vmem:[#allocation2 + $0x10] sm:$0xf] %v116
    // Predicated region
    $region10: #{tpu_custom_call.1} parent=1 // pred_check
      _
    $region11: #{tpu_custom_call.1} parent=1 // pred_check_branch
      %123 = sbr.rel (0) target = $region13
    $region12: #{tpu_custom_call.1} parent=1 // pred_region
      %s125 = ssub.s32 384, 384
      %126 = vsyncadd [#allocation3], %s125
      %s127 = sshll.u32 [#allocation2], 4
      %s128 = int_to_ptr.vmem [resolvable:$true] %s127
      %133 = dma.vmem_to_hbm [thread:$0]  %s128, 384, %s2, [#allocation3], 128, 128, 8
    $region13: #{tpu_custom_call.1} parent=1 // pred_fallthru
      _
    // Predicated region
    $region14: #{tpu_custom_call.1} parent=1 // pred_check
      _
    $region15: #{tpu_custom_call.1} parent=1 // pred_check_branch
      %135 = sbr.rel (0) target = $region17
    $region16: #{tpu_custom_call.1} parent=1 // pred_region
      %136 = dma.done [#allocation3], 384
    $region17: #{tpu_custom_call.1} parent=1 // pred_fallthru
      _
    %137 = vsyncpa [#allocation3], 1

</llo_original>
